<compile_context>
chip_gen: v6e
topology: v6e:2x2x1
jax: 0.10.0
libtpu: 0.0.40
codegen_flags: <defaults>
</compile_context>

<pallas_src>
import functools

import jax
import jax.numpy as jnp
from jax import lax
from jax.experimental import pallas as pl
from jax.experimental.pallas import tpu as pltpu

_EPS = 1e-5
_MXU_MIN_CIN = 64          # below this the 1x1 conv runs on the VPU in f32
_VMEM_BUDGET = 36 * 1024 * 1024   # per-step working-set budget (v7x-safe)


def _round_up(x, m):
    return (x + m - 1) // m * m


# ----------------------------- Pallas kernel ------------------------------- #

def _fused_sepconv_kernel(x_ref, wdw_ref, bdw_ref, wpw_ref, bpw_ref, o_ref,
                          *, Wp, Lw, B, use_mxu):
    """Fused depthwise-3x3 + BN + ReLU + pointwise-1x1 + BN + ReLU.

    x_ref:   (B, Cin, Lp_pad)  padded input, CHW with spatial flattened row-major
    wdw_ref: (Cin, 9)          depthwise taps (kh*3+kw), BN scale folded in (f32)
    bdw_ref: (Cin, 1)          folded depthwise BN bias (f32)
    wpw_ref: (Cout, Cin)       pointwise weights, BN scale folded in (bf16 or f32)
    bpw_ref: (Cout, 1)         folded pointwise BN bias (f32)
    o_ref:   (B, Cout, Lw)     fused output slab, Lw = round_up(Hp*Wp, 128)
    """
    wdw = wdw_ref[...]                 # (Cin, 9)
    bdw = bdw_ref[...]                 # (Cin, 1)
    bpw = bpw_ref[...]                 # (Cout, 1)
    Cin = wpw_ref.shape[1]

    for b in range(B):                 # static unroll over the batch-fold tile
        # Depthwise 3x3 as 9 statically shifted lane windows, streamed from the
        # VMEM ref (keeps register pressure to the accumulator only).
        acc = x_ref[b, :, 0:Lw] * wdw[:, 0:1]
        for t in range(1, 9):
            kh, kw = divmod(t, 3)
            s = kh * Wp + kw
            acc = acc + x_ref[b, :, s:s + Lw] * wdw[:, t:t + 1]
        y = jnp.maximum(acc + bdw, 0.0)                       # (Cin, Lw) f32

        if use_mxu:
            # Large Cin: bf16 MXU matmul, f32 accumulate.
            z = jnp.dot(wpw_ref[...], y.astype(jnp.bfloat16),
                        preferred_element_type=jnp.float32)   # (Cout, Lw)
        else:
            # Small Cin: f32 VPU broadcast-MAC over channels (MXU would be <1%
            # utilized with the contraction padded to 128/256).
            w = wpw_ref[...]                                   # (Cout, Cin) f32
            z = w[:, 0:1] * y[0:1, :]
            for c in range(1, Cin):
                z = z + w[:, c:c + 1] * y[c:c + 1, :]

        o_ref[b] = jnp.maximum(z + bpw, 0.0).astype(o_ref.dtype)


# ------------------------------ JAX wrapper -------------------------------- #

def _fold_bn(gamma, beta, mean, var, eps=_EPS):
    scale = gamma / jnp.sqrt(var + eps)
    bias = beta - mean * scale
    return scale.astype(jnp.float32), bias.astype(jnp.float32)


def _choose_batch_fold(N, per_image_bytes, budget_bytes=_VMEM_BUDGET):
    """Largest divisor of N under the VMEM budget that keeps >=2 grid steps."""
    bmax = max(1, budget_bytes // max(per_image_bytes, 1))
    best = 1
    for b in range(1, N + 1):
        if N % b != 0 or b > bmax:
            continue
        if N >= 2 and N // b < 2:     # keep >= 2 parallel steps (v7x: 2 TCs)
            continue
        best = b
    return best


def separable_conv(x_nchw, params, down_sample=False, out_dtype=jnp.float32):
    """Forward pass of SeparableConv.  x_nchw: (N, Cin, H, W) float32 (NCHW)."""
    N, Cin, H, W = x_nchw.shape
    Cout = params["pw_w"].shape[0]

    Hp, Wp = H + 2, W + 2
    L = Hp * Wp                                  # valid flattened padded spatial
    L_pad = _round_up(L, 128)                    # lane-dense output slab / image
    max_shift = 2 * Wp + 2                       # largest depthwise tap shift
    Lp_pad = _round_up(L_pad + max_shift, 128)   # lane width of input slab / image
    r_extra = -(-(Lp_pad - L) // Wp)             # extra zero rows: one pad covers tail
    Lfull = (Hp + r_extra) * Wp                  # >= Lp_pad

    use_mxu = Cin >= _MXU_MIN_CIN

    # Fold BN scale into the conv weights (epilogue becomes +bias, ReLU only).
    dw_scale, dw_bias = _fold_bn(params["dw_gamma"], params["dw_beta"],
                                 params["dw_mean"], params["dw_var"])
    w_dw = params["dw_w"].reshape(Cin, 9).astype(jnp.float32) * dw_scale[:, None]
    b_dw = dw_bias.reshape(Cin, 1)

    pw_scale, pw_bias = _fold_bn(params["pw_gamma"], params["pw_beta"],
                                 params["pw_mean"], params["pw_var"])
    w_pw = (params["pw_w"].reshape(Cout, Cin).astype(jnp.float32)
            * pw_scale[:, None])
    if use_mxu:
        w_pw = w_pw.astype(jnp.bfloat16)
    b_pw = pw_bias.reshape(Cout, 1)

    # NCHW input used directly (no transpose): ONE pad adds the 1-pixel halo and
    # enough extra zero rows that the flattened tail covers every tap window.
    x = x_nchw.astype(jnp.float32)
    x_flat = jnp.pad(x, ((0, 0), (0, 0), (1, 1 + r_extra), (1, 1))
                     ).reshape(N, Cin, Lfull)

    out_bytes = jnp.dtype(out_dtype).itemsize
    per_image = (2 * (Cin * Lp_pad * 4 + Cout * L_pad * out_bytes)
                 + (Cin + Cout) * L_pad * 4)
    B = _choose_batch_fold(N, per_image)

    out_flat = pl.pallas_call(
        functools.partial(_fused_sepconv_kernel,
                          Wp=Wp, Lw=L_pad, B=B, use_mxu=use_mxu),
        out_shape=jax.ShapeDtypeStruct((N, Cout, L_pad), out_dtype),
        grid_spec=pltpu.PrefetchScalarGridSpec(
            num_scalar_prefetch=0,
            grid=(N // B,),                          # parallel over batch tiles
            in_specs=[
                pl.BlockSpec((B, Cin, Lp_pad), lambda n: (n, 0, 0)),
                pl.BlockSpec((Cin, 9), lambda n: (0, 0)),
                pl.BlockSpec((Cin, 1), lambda n: (0, 0)),
                pl.BlockSpec((Cout, Cin), lambda n: (0, 0)),
                pl.BlockSpec((Cout, 1), lambda n: (0, 0)),
            ],
            out_specs=pl.BlockSpec((B, Cout, L_pad), lambda n: (n, 0, 0)),
        ),
        compiler_params=pltpu.CompilerParams(
            dimension_semantics=("parallel",),
            vmem_limit_bytes=48 * 1024 * 1024,       # headroom on v7x's 64 MiB
        ),
    )(x_flat, w_dw, b_dw, w_pw, b_pw)

    # Recover NCHW directly from the CHW-flat layout (no transpose needed);
    # stride-2 downsample of a pad=1 3x3 conv == stride-1 output subsampled.
    stride = 2 if down_sample else 1
    out_full = out_flat[:, :, :L].reshape(N, Cout, Hp, Wp)
    return out_full[:, :, :H:stride, :W:stride]


# --------------------------- pure-JAX reference ----------------------------- #

def separable_conv_ref(x, params, down_sample=False):
    s = 2 if down_sample else 1
    Cin = x.shape[1]
    y = lax.conv_general_dilated(
        x, params["dw_w"], window_strides=(s, s), padding=((1, 1), (1, 1)),
        feature_group_count=Cin, dimension_numbers=("NCHW", "OIHW", "NCHW"),
        precision=lax.Precision.HIGHEST)
    sc, bi = _fold_bn(params["dw_gamma"], params["dw_beta"],
                      params["dw_mean"], params["dw_var"])
    y = jnp.maximum(y * sc[None, :, None, None] + bi[None, :, None, None], 0.0)
    z = lax.conv_general_dilated(
        y, params["pw_w"], window_strides=(1, 1), padding=((0, 0), (0, 0)),
        dimension_numbers=("NCHW", "OIHW", "NCHW"),
        precision=lax.Precision.HIGHEST)
    sc2, bi2 = _fold_bn(params["pw_gamma"], params["pw_beta"],
                        params["pw_mean"], params["pw_var"])
    return jnp.maximum(z * sc2[None, :, None, None] + bi2[None, :, None, None], 0.0)


# --------------------------------- main ------------------------------------ #

if __name__ == "__main__":
    key = jax.random.PRNGKey(0)
    N, H, W = 2, 16, 16
    in_channel, out_channel, alpha = 8, 16, 1.0
    Cin, Cout = int(in_channel * alpha), int(out_channel * alpha)

    ks = jax.random.split(key, 11)
    x = jax.random.normal(ks[0], (N, Cin, H, W), jnp.float32)
    params = dict(
        dw_w=jax.random.normal(ks[1], (Cin, 1, 3, 3), jnp.float32) * 0.2,
        dw_gamma=jax.random.uniform(ks[2], (Cin,), jnp.float32, 0.5, 1.5),
        dw_beta=jax.random.normal(ks[3], (Cin,), jnp.float32) * 0.1,
        dw_mean=jax.random.normal(ks[4], (Cin,), jnp.float32) * 0.1,
        dw_var=jax.random.uniform(ks[5], (Cin,), jnp.float32, 0.5, 1.5),
        pw_w=jax.random.normal(ks[6], (Cout, Cin, 1, 1), jnp.float32) * 0.2,
        pw_gamma=jax.random.uniform(ks[7], (Cout,), jnp.float32, 0.5, 1.5),
        pw_beta=jax.random.normal(ks[8], (Cout,), jnp.float32) * 0.1,
        pw_mean=jax.random.normal(ks[9], (Cout,), jnp.float32) * 0.1,
        pw_var=jax.random.uniform(ks[10], (Cout,), jnp.float32, 0.5, 1.5),
    )

    # Cin=8 < 64 -> all-f32 VPU pointwise path, so the tolerance can be tight.
    out = jax.block_until_ready(separable_conv(x, params, down_sample=False))
    ref = separable_conv_ref(x, params, down_sample=False)
    assert out.shape == (N, Cout, H, W), out.shape
    assert jnp.allclose(out, ref, atol=1e-3, rtol=1e-3), float(
        jnp.max(jnp.abs(out - ref)))

    out_ds = jax.block_until_ready(separable_conv(x, params, down_sample=True))
    ref_ds = separable_conv_ref(x, params, down_sample=True)
    assert out_ds.shape == (N, Cout, H // 2, W // 2), out_ds.shape
    assert jnp.allclose(out_ds, ref_ds, atol=1e-3, rtol=1e-3), float(
        jnp.max(jnp.abs(out_ds - ref_ds)))

    print("KERNEL_OK")
</pallas_src>

<mosaic_0001>
module attributes {stable_mosaic.version = 11 : i64} {
  func.func @_fused_sepconv_kernel(%arg0: i32, %arg1: memref<1x8x512xf32, #tpu.memory_space<vmem>>, %arg2: memref<8x9xf32, #tpu.memory_space<vmem>>, %arg3: memref<8x1xf32, #tpu.memory_space<vmem>>, %arg4: memref<16x8xf32, #tpu.memory_space<vmem>>, %arg5: memref<16x1xf32, #tpu.memory_space<vmem>>, %arg6: memref<1x16x384xf32, #tpu.memory_space<vmem>>) attributes {dimension_semantics = [#tpu.dimension_semantics<parallel>], iteration_bounds = array<i64: 2>, scalar_prefetch = 0 : i64, scratch_operands = 0 : i64, tpu.core_type = #tpu.core_type<tc>, window_params = [{transform_indices = @transform_0, window_bounds = array<i64: 1, 8, 512>}, {pipeline_mode = #tpu.pipeline_mode<synchronous>, transform_indices = @transform_1, window_bounds = array<i64: 8, 9>}, {pipeline_mode = #tpu.pipeline_mode<synchronous>, transform_indices = @transform_2, window_bounds = array<i64: 8, 1>}, {pipeline_mode = #tpu.pipeline_mode<synchronous>, transform_indices = @transform_3, window_bounds = array<i64: 16, 8>}, {pipeline_mode = #tpu.pipeline_mode<synchronous>, transform_indices = @transform_4, window_bounds = array<i64: 16, 1>}, {transform_indices = @transform_5, window_bounds = array<i64: 1, 16, 384>}]} {
    %c0 = arith.constant 0 : index
    %c0_0 = arith.constant 0 : index
    %0 = vector.load %arg2[%c0, %c0_0] : memref<8x9xf32, #tpu.memory_space<vmem>>, vector<8x9xf32>
    %c0_1 = arith.constant 0 : index
    %c0_2 = arith.constant 0 : index
    %1 = vector.load %arg3[%c0_1, %c0_2] : memref<8x1xf32, #tpu.memory_space<vmem>>, vector<8x1xf32>
    %c0_3 = arith.constant 0 : index
    %c0_4 = arith.constant 0 : index
    %2 = vector.load %arg5[%c0_3, %c0_4] : memref<16x1xf32, #tpu.memory_space<vmem>>, vector<16x1xf32>
    %c0_5 = arith.constant 0 : index
    %c0_6 = arith.constant 0 : index
    %c0_7 = arith.constant 0 : index
    %3 = vector.load %arg1[%c0_5, %c0_6, %c0_7] : memref<1x8x512xf32, #tpu.memory_space<vmem>>, vector<1x8x384xf32>
    %4 = vector.shape_cast %3 : vector<1x8x384xf32> to vector<8x384xf32>
    %5 = vector.extract_strided_slice %0 {offsets = [0, 0], sizes = [8, 1], strides = [1, 1]} : vector<8x9xf32> to vector<8x1xf32>
    %6 = vector.broadcast %5 : vector<8x1xf32> to vector<8x384xf32>
    %7 = arith.mulf %4, %6 : vector<8x384xf32>
    %c0_8 = arith.constant 0 : index
    %c0_9 = arith.constant 0 : index
    %c1 = arith.constant 1 : index
    %8 = vector.load %arg1[%c0_8, %c0_9, %c1] : memref<1x8x512xf32, #tpu.memory_space<vmem>>, vector<1x8x384xf32>
    %9 = vector.shape_cast %8 : vector<1x8x384xf32> to vector<8x384xf32>
    %10 = vector.extract_strided_slice %0 {offsets = [0, 1], sizes = [8, 1], strides = [1, 1]} : vector<8x9xf32> to vector<8x1xf32>
    %11 = vector.broadcast %10 : vector<8x1xf32> to vector<8x384xf32>
    %12 = arith.mulf %9, %11 : vector<8x384xf32>
    %13 = arith.addf %7, %12 : vector<8x384xf32>
    %c0_10 = arith.constant 0 : index
    %c0_11 = arith.constant 0 : index
    %c2 = arith.constant 2 : index
    %14 = vector.load %arg1[%c0_10, %c0_11, %c2] : memref<1x8x512xf32, #tpu.memory_space<vmem>>, vector<1x8x384xf32>
    %15 = vector.shape_cast %14 : vector<1x8x384xf32> to vector<8x384xf32>
    %16 = vector.extract_strided_slice %0 {offsets = [0, 2], sizes = [8, 1], strides = [1, 1]} : vector<8x9xf32> to vector<8x1xf32>
    %17 = vector.broadcast %16 : vector<8x1xf32> to vector<8x384xf32>
    %18 = arith.mulf %15, %17 : vector<8x384xf32>
    %19 = arith.addf %13, %18 : vector<8x384xf32>
    %c0_12 = arith.constant 0 : index
    %c0_13 = arith.constant 0 : index
    %c18 = arith.constant 18 : index
    %20 = vector.load %arg1[%c0_12, %c0_13, %c18] : memref<1x8x512xf32, #tpu.memory_space<vmem>>, vector<1x8x384xf32>
    %21 = vector.shape_cast %20 : vector<1x8x384xf32> to vector<8x384xf32>
    %22 = vector.extract_strided_slice %0 {offsets = [0, 3], sizes = [8, 1], strides = [1, 1]} : vector<8x9xf32> to vector<8x1xf32>
    %23 = vector.broadcast %22 : vector<8x1xf32> to vector<8x384xf32>
    %24 = arith.mulf %21, %23 : vector<8x384xf32>
    %25 = arith.addf %19, %24 : vector<8x384xf32>
    %c0_14 = arith.constant 0 : index
    %c0_15 = arith.constant 0 : index
    %c19 = arith.constant 19 : index
    %26 = vector.load %arg1[%c0_14, %c0_15, %c19] : memref<1x8x512xf32, #tpu.memory_space<vmem>>, vector<1x8x384xf32>
    %27 = vector.shape_cast %26 : vector<1x8x384xf32> to vector<8x384xf32>
    %28 = vector.extract_strided_slice %0 {offsets = [0, 4], sizes = [8, 1], strides = [1, 1]} : vector<8x9xf32> to vector<8x1xf32>
    %29 = vector.broadcast %28 : vector<8x1xf32> to vector<8x384xf32>
    %30 = arith.mulf %27, %29 : vector<8x384xf32>
    %31 = arith.addf %25, %30 : vector<8x384xf32>
    %c0_16 = arith.constant 0 : index
    %c0_17 = arith.constant 0 : index
    %c20 = arith.constant 20 : index
    %32 = vector.load %arg1[%c0_16, %c0_17, %c20] : memref<1x8x512xf32, #tpu.memory_space<vmem>>, vector<1x8x384xf32>
    %33 = vector.shape_cast %32 : vector<1x8x384xf32> to vector<8x384xf32>
    %34 = vector.extract_strided_slice %0 {offsets = [0, 5], sizes = [8, 1], strides = [1, 1]} : vector<8x9xf32> to vector<8x1xf32>
    %35 = vector.broadcast %34 : vector<8x1xf32> to vector<8x384xf32>
    %36 = arith.mulf %33, %35 : vector<8x384xf32>
    %37 = arith.addf %31, %36 : vector<8x384xf32>
    %c0_18 = arith.constant 0 : index
    %c0_19 = arith.constant 0 : index
    %c36 = arith.constant 36 : index
    %38 = vector.load %arg1[%c0_18, %c0_19, %c36] : memref<1x8x512xf32, #tpu.memory_space<vmem>>, vector<1x8x384xf32>
    %39 = vector.shape_cast %38 : vector<1x8x384xf32> to vector<8x384xf32>
    %40 = vector.extract_strided_slice %0 {offsets = [0, 6], sizes = [8, 1], strides = [1, 1]} : vector<8x9xf32> to vector<8x1xf32>
    %41 = vector.broadcast %40 : vector<8x1xf32> to vector<8x384xf32>
    %42 = arith.mulf %39, %41 : vector<8x384xf32>
    %43 = arith.addf %37, %42 : vector<8x384xf32>
    %c0_20 = arith.constant 0 : index
    %c0_21 = arith.constant 0 : index
    %c37 = arith.constant 37 : index
    %44 = vector.load %arg1[%c0_20, %c0_21, %c37] : memref<1x8x512xf32, #tpu.memory_space<vmem>>, vector<1x8x384xf32>
    %45 = vector.shape_cast %44 : vector<1x8x384xf32> to vector<8x384xf32>
    %46 = vector.extract_strided_slice %0 {offsets = [0, 7], sizes = [8, 1], strides = [1, 1]} : vector<8x9xf32> to vector<8x1xf32>
    %47 = vector.broadcast %46 : vector<8x1xf32> to vector<8x384xf32>
    %48 = arith.mulf %45, %47 : vector<8x384xf32>
    %49 = arith.addf %43, %48 : vector<8x384xf32>
    %c0_22 = arith.constant 0 : index
    %c0_23 = arith.constant 0 : index
    %c38 = arith.constant 38 : index
    %50 = vector.load %arg1[%c0_22, %c0_23, %c38] : memref<1x8x512xf32, #tpu.memory_space<vmem>>, vector<1x8x384xf32>
    %51 = vector.shape_cast %50 : vector<1x8x384xf32> to vector<8x384xf32>
    %52 = vector.extract_strided_slice %0 {offsets = [0, 8], sizes = [8, 1], strides = [1, 1]} : vector<8x9xf32> to vector<8x1xf32>
    %53 = vector.broadcast %52 : vector<8x1xf32> to vector<8x384xf32>
    %54 = arith.mulf %51, %53 : vector<8x384xf32>
    %55 = arith.addf %49, %54 : vector<8x384xf32>
    %56 = vector.broadcast %1 : vector<8x1xf32> to vector<8x384xf32>
    %57 = arith.addf %55, %56 : vector<8x384xf32>
    %cst = arith.constant 0.000000e+00 : f32
    %58 = vector.broadcast %cst : f32 to vector<8x384xf32>
    %59 = arith.maximumf %57, %58 : vector<8x384xf32>
    %c0_24 = arith.constant 0 : index
    %c0_25 = arith.constant 0 : index
    %60 = vector.load %arg4[%c0_24, %c0_25] : memref<16x8xf32, #tpu.memory_space<vmem>>, vector<16x8xf32>
    %61 = vector.extract_strided_slice %60 {offsets = [0, 0], sizes = [16, 1], strides = [1, 1]} : vector<16x8xf32> to vector<16x1xf32>
    %62 = vector.extract_strided_slice %59 {offsets = [0, 0], sizes = [1, 384], strides = [1, 1]} : vector<8x384xf32> to vector<1x384xf32>
    %63 = vector.broadcast %61 : vector<16x1xf32> to vector<16x384xf32>
    %64 = vector.broadcast %62 : vector<1x384xf32> to vector<16x384xf32>
    %65 = arith.mulf %63, %64 : vector<16x384xf32>
    %66 = vector.extract_strided_slice %60 {offsets = [0, 1], sizes = [16, 1], strides = [1, 1]} : vector<16x8xf32> to vector<16x1xf32>
    %67 = vector.extract_strided_slice %59 {offsets = [1, 0], sizes = [1, 384], strides = [1, 1]} : vector<8x384xf32> to vector<1x384xf32>
    %68 = vector.broadcast %66 : vector<16x1xf32> to vector<16x384xf32>
    %69 = vector.broadcast %67 : vector<1x384xf32> to vector<16x384xf32>
    %70 = arith.mulf %68, %69 : vector<16x384xf32>
    %71 = arith.addf %65, %70 : vector<16x384xf32>
    %72 = vector.extract_strided_slice %60 {offsets = [0, 2], sizes = [16, 1], strides = [1, 1]} : vector<16x8xf32> to vector<16x1xf32>
    %73 = vector.extract_strided_slice %59 {offsets = [2, 0], sizes = [1, 384], strides = [1, 1]} : vector<8x384xf32> to vector<1x384xf32>
    %74 = vector.broadcast %72 : vector<16x1xf32> to vector<16x384xf32>
    %75 = vector.broadcast %73 : vector<1x384xf32> to vector<16x384xf32>
    %76 = arith.mulf %74, %75 : vector<16x384xf32>
    %77 = arith.addf %71, %76 : vector<16x384xf32>
    %78 = vector.extract_strided_slice %60 {offsets = [0, 3], sizes = [16, 1], strides = [1, 1]} : vector<16x8xf32> to vector<16x1xf32>
    %79 = vector.extract_strided_slice %59 {offsets = [3, 0], sizes = [1, 384], strides = [1, 1]} : vector<8x384xf32> to vector<1x384xf32>
    %80 = vector.broadcast %78 : vector<16x1xf32> to vector<16x384xf32>
    %81 = vector.broadcast %79 : vector<1x384xf32> to vector<16x384xf32>
    %82 = arith.mulf %80, %81 : vector<16x384xf32>
    %83 = arith.addf %77, %82 : vector<16x384xf32>
    %84 = vector.extract_strided_slice %60 {offsets = [0, 4], sizes = [16, 1], strides = [1, 1]} : vector<16x8xf32> to vector<16x1xf32>
    %85 = vector.extract_strided_slice %59 {offsets = [4, 0], sizes = [1, 384], strides = [1, 1]} : vector<8x384xf32> to vector<1x384xf32>
    %86 = vector.broadcast %84 : vector<16x1xf32> to vector<16x384xf32>
    %87 = vector.broadcast %85 : vector<1x384xf32> to vector<16x384xf32>
    %88 = arith.mulf %86, %87 : vector<16x384xf32>
    %89 = arith.addf %83, %88 : vector<16x384xf32>
    %90 = vector.extract_strided_slice %60 {offsets = [0, 5], sizes = [16, 1], strides = [1, 1]} : vector<16x8xf32> to vector<16x1xf32>
    %91 = vector.extract_strided_slice %59 {offsets = [5, 0], sizes = [1, 384], strides = [1, 1]} : vector<8x384xf32> to vector<1x384xf32>
    %92 = vector.broadcast %90 : vector<16x1xf32> to vector<16x384xf32>
    %93 = vector.broadcast %91 : vector<1x384xf32> to vector<16x384xf32>
    %94 = arith.mulf %92, %93 : vector<16x384xf32>
    %95 = arith.addf %89, %94 : vector<16x384xf32>
    %96 = vector.extract_strided_slice %60 {offsets = [0, 6], sizes = [16, 1], strides = [1, 1]} : vector<16x8xf32> to vector<16x1xf32>
    %97 = vector.extract_strided_slice %59 {offsets = [6, 0], sizes = [1, 384], strides = [1, 1]} : vector<8x384xf32> to vector<1x384xf32>
    %98 = vector.broadcast %96 : vector<16x1xf32> to vector<16x384xf32>
    %99 = vector.broadcast %97 : vector<1x384xf32> to vector<16x384xf32>
    %100 = arith.mulf %98, %99 : vector<16x384xf32>
    %101 = arith.addf %95, %100 : vector<16x384xf32>
    %102 = vector.extract_strided_slice %60 {offsets = [0, 7], sizes = [16, 1], strides = [1, 1]} : vector<16x8xf32> to vector<16x1xf32>
    %103 = vector.extract_strided_slice %59 {offsets = [7, 0], sizes = [1, 384], strides = [1, 1]} : vector<8x384xf32> to vector<1x384xf32>
    %104 = vector.broadcast %102 : vector<16x1xf32> to vector<16x384xf32>
    %105 = vector.broadcast %103 : vector<1x384xf32> to vector<16x384xf32>
    %106 = arith.mulf %104, %105 : vector<16x384xf32>
    %107 = arith.addf %101, %106 : vector<16x384xf32>
    %108 = vector.broadcast %2 : vector<16x1xf32> to vector<16x384xf32>
    %109 = arith.addf %107, %108 : vector<16x384xf32>
    %cst_26 = arith.constant 0.000000e+00 : f32
    %110 = vector.broadcast %cst_26 : f32 to vector<16x384xf32>
    %111 = arith.maximumf %109, %110 : vector<16x384xf32>
    %c0_27 = arith.constant 0 : index
    %c0_28 = arith.constant 0 : index
    %c0_29 = arith.constant 0 : index
    %112 = vector.load %arg6[%c0_27, %c0_28, %c0_29] : memref<1x16x384xf32, #tpu.memory_space<vmem>>, vector<1x16x384xf32>
    %113 = vector.shape_cast %112 : vector<1x16x384xf32> to vector<16x384xf32>
    %114 = vector.shape_cast %111 : vector<16x384xf32> to vector<1x16x384xf32>
    tpu.vector_store %arg6[%c0_27, %c0_28, %c0_29], %114 {strides = array<i32>} : memref<1x16x384xf32, #tpu.memory_space<vmem>>, vector<1x16x384xf32>,
    return
  }
  func.func @transform_0(%arg0: i32) -> (i32, i32, i32) {
    %c0_i32 = arith.constant 0 : i32
    %c0_i32_0 = arith.constant 0 : i32
    %c0_i32_1 = arith.constant 0 : i32
    return %arg0, %c0_i32, %c0_i32_0 : i32, i32, i32
  }
  func.func @transform_1(%arg0: i32) -> (i32, i32) {
    %c0_i32 = arith.constant 0 : i32
    %c0_i32_0 = arith.constant 0 : i32
    %c0_i32_1 = arith.constant 0 : i32
    return %c0_i32, %c0_i32_0 : i32, i32
  }
  func.func @transform_2(%arg0: i32) -> (i32, i32) {
    %c0_i32 = arith.constant 0 : i32
    %c0_i32_0 = arith.constant 0 : i32
    %c0_i32_1 = arith.constant 0 : i32
    return %c0_i32, %c0_i32_0 : i32, i32
  }
  func.func @transform_3(%arg0: i32) -> (i32, i32) {
    %c0_i32 = arith.constant 0 : i32
    %c0_i32_0 = arith.constant 0 : i32
    %c0_i32_1 = arith.constant 0 : i32
    return %c0_i32, %c0_i32_0 : i32, i32
  }
  func.func @transform_4(%arg0: i32) -> (i32, i32) {
    %c0_i32 = arith.constant 0 : i32
    %c0_i32_0 = arith.constant 0 : i32
    %c0_i32_1 = arith.constant 0 : i32
    return %c0_i32, %c0_i32_0 : i32, i32
  }
  func.func @transform_5(%arg0: i32) -> (i32, i32, i32) {
    %c0_i32 = arith.constant 0 : i32
    %c0_i32_0 = arith.constant 0 : i32
    %c0_i32_1 = arith.constant 0 : i32
    return %arg0, %c0_i32, %c0_i32_0 : i32, i32, i32
  }
}

</mosaic_0001>

<llo_original>
// kernel: tpu_custom_call.1
$region0: #{tpu_custom_call.1}
  #allocation0 [shape = 'u32[]', space=smem, size = 0x4, offset = 0x4, fixed_abs, tag = 'smem constant byte address 0x4 - core index']
  #allocation1 [shape = 'u32[144,128]{1,0:T(1,128)}', space=vmem, size = 0x12000, scoped, tag = 'internal scratch']
  %s0 = inlined_call_operand.hbm [shape: f32[2,8,522], index: 0, kind: input, shape index: {}]
  %s1 = inlined_call_operand.vmem [shape: f32[8,9], index: 1, kind: input, shape index: {}]
  %s2 = inlined_call_operand.vmem [shape: f32[8,1], index: 2, kind: input, shape index: {}]
  %s3 = inlined_call_operand.vmem [shape: f32[16,8], index: 3, kind: input, shape index: {}]
  %s4 = inlined_call_operand.vmem [shape: f32[16,1], index: 4, kind: input, shape index: {}]
  %s5 = inlined_call_operand.hbm [shape: f32[2,16,384], index: 5, kind: output, shape index: {}]
  %s6 = sld [smem:[#allocation0]]
  $region57: #{tpu_custom_call.1} parent=0
    _
  %s8 = ssub.s32 1, %s6
  %s9 = scalar_select 0, %s8, %s6
  $region1: #{tpu_custom_call.1} parent=0
    #allocation2 [shape = 'u8[32768]{0}', space=vmem, size = 0x8000, scoped, tag = 'input window, operand 0']
    #allocation3 [shape = 's32[2]{0}', space=sflag, size = 0x8, scoped, tag = 'scoped memory for tpu_custom_call.1']
    #allocation4 [shape = 's32[2]{0}', space=sflag, size = 0x8, scoped, tag = 'scoped memory for tpu_custom_call.1']
    #allocation5 [shape = 'u8[49152]{0}', space=vmem, size = 0xc000, scoped, tag = 'output window, operand 0']
    %10 = vsyncpa [#allocation3], 0
    %s11 = scalar_lea.sflag [#allocation3], 1
    %12 = vsyncpa %s11, 0
    %13 = vsyncpa [#allocation4], 0
    %s14 = scalar_lea.sflag [#allocation4], 1
    %15 = vsyncpa %s14, 0
    loop: start=0, step=1, limit=4
    $region2: #{tpu_custom_call.1} parent=1 // loop_pre_header
      _
    $region3: #{tpu_custom_call.1} parent=1 // loop_header
      %s17 = sphi 0, %s21
      %p18 = scmp.ge.s32.totalorder %s17, 4
      %s27 = sphi 0, %s29
      %s30 = sphi 0, %s27
      %s31 = sphi 0, %s30
      %s47 = sphi 0, %s31
      %s51 = sphi 0, %s51
      %s53 = sphi 0, %s51
      %s54 = sphi 0, %s53
      %s68 = sphi 0, %s54
      %s72 = sphi 0, %s72
      %s74 = sphi 0, %s72
      %s75 = sphi 0, %s74
      %s89 = sphi 0, %s75
      %s93 = sphi 0, %s93
      %s95 = sphi 0, %s93
      %s96 = sphi 0, %s95
      %s110 = sphi 0, %s96
      %s114 = sphi 0, %s114
      %s116 = sphi 0, %s114
      %s117 = sphi 0, %s116
      %s131 = sphi 0, %s117
      %s137 = sphi 0, %s139
      %s140 = sphi 0, %s137
      %s141 = sphi 0, %s140
      %s157 = sphi 0, %s141
    $region4: #{tpu_custom_call.1} parent=1 // loop_header_branch
      %20 = sbr.rel (%p18) target = $region8
    $region5: #{tpu_custom_call.1} parent=1 // loop_body
      %s22 = ssub.s32 %s17, 1
      %s23 = ssub.s32 %s17, 2
      %s24 = sadd.s32 %s17, 1
      %s25 = ssub.s32 %s17, %s24
      %p26 = scmp.eq.s32.totalorder %s25, 0
      %s28 = sadd.s32 %s27, 1
      %s29 = scalar_select %p26, %s27, %s28
      %p32 = pneg %p26
      %p33 = scmp.eq.s32.totalorder %s17, 1
      %p34 = por %p32, %p33
      %p35 = scmp.ne.s32.totalorder %s27, %s30
      %p36 = scmp.eq.s32.totalorder %s17, 0
      %p37 = por %p35, %p36
      %p38 = scmp.ne.s32.totalorder %s27, %s30
      %p39 = scmp.eq.s32.totalorder %s22, 1
      %p40 = por %p38, %p39
      %p41 = scmp.ne.s32.totalorder %s30, %s31
      %p42 = scmp.eq.s32.totalorder %s22, 0
      %p43 = por %p41, %p42
      %p44 = scmp.ne.s32.totalorder %s30, %s31
      %p45 = scmp.eq.s32.totalorder %s23, 1
      %p46 = por %p44, %p45
      %p48 = scmp.ne.s32.totalorder %s31, %s47
      %p49 = scmp.eq.s32.totalorder %s23, 0
      %p50 = por %p48, %p49
      %s52 = sadd.s32 %s51, 1
      %p55 = scmp.eq.s32.totalorder %s17, 1
      %p56 = scmp.ne.s32.totalorder %s51, %s53
      %p57 = scmp.eq.s32.totalorder %s17, 0
      %p58 = por %p56, %p57
      %p59 = scmp.ne.s32.totalorder %s51, %s53
      %p60 = scmp.eq.s32.totalorder %s22, 1
      %p61 = por %p59, %p60
      %p62 = scmp.ne.s32.totalorder %s53, %s54
      %p63 = scmp.eq.s32.totalorder %s22, 0
      %p64 = por %p62, %p63
      %p65 = scmp.ne.s32.totalorder %s53, %s54
      %p66 = scmp.eq.s32.totalorder %s23, 1
      %p67 = por %p65, %p66
      %p69 = scmp.ne.s32.totalorder %s54, %s68
      %p70 = scmp.eq.s32.totalorder %s23, 0
      %p71 = por %p69, %p70
      %s73 = sadd.s32 %s72, 1
      %p76 = scmp.eq.s32.totalorder %s17, 1
      %p77 = scmp.ne.s32.totalorder %s72, %s74
      %p78 = scmp.eq.s32.totalorder %s17, 0
      %p79 = por %p77, %p78
      %p80 = scmp.ne.s32.totalorder %s72, %s74
      %p81 = scmp.eq.s32.totalorder %s22, 1
      %p82 = por %p80, %p81
      %p83 = scmp.ne.s32.totalorder %s74, %s75
      %p84 = scmp.eq.s32.totalorder %s22, 0
      %p85 = por %p83, %p84
      %p86 = scmp.ne.s32.totalorder %s74, %s75
      %p87 = scmp.eq.s32.totalorder %s23, 1
      %p88 = por %p86, %p87
      %p90 = scmp.ne.s32.totalorder %s75, %s89
      %p91 = scmp.eq.s32.totalorder %s23, 0
      %p92 = por %p90, %p91
      %s94 = sadd.s32 %s93, 1
      %p97 = scmp.eq.s32.totalorder %s17, 1
      %p98 = scmp.ne.s32.totalorder %s93, %s95
      %p99 = scmp.eq.s32.totalorder %s17, 0
      %p100 = por %p98, %p99
      %p101 = scmp.ne.s32.totalorder %s93, %s95
      %p102 = scmp.eq.s32.totalorder %s22, 1
      %p103 = por %p101, %p102
      %p104 = scmp.ne.s32.totalorder %s95, %s96
      %p105 = scmp.eq.s32.totalorder %s22, 0
      %p106 = por %p104, %p105
      %p107 = scmp.ne.s32.totalorder %s95, %s96
      %p108 = scmp.eq.s32.totalorder %s23, 1
      %p109 = por %p107, %p108
      %p111 = scmp.ne.s32.totalorder %s96, %s110
      %p112 = scmp.eq.s32.totalorder %s23, 0
      %p113 = por %p111, %p112
      %s115 = sadd.s32 %s114, 1
      %p118 = scmp.eq.s32.totalorder %s17, 1
      %p119 = scmp.ne.s32.totalorder %s114, %s116
      %p120 = scmp.eq.s32.totalorder %s17, 0
      %p121 = por %p119, %p120
      %p122 = scmp.ne.s32.totalorder %s114, %s116
      %p123 = scmp.eq.s32.totalorder %s22, 1
      %p124 = por %p122, %p123
      %p125 = scmp.ne.s32.totalorder %s116, %s117
      %p126 = scmp.eq.s32.totalorder %s22, 0
      %p127 = por %p125, %p126
      %p128 = scmp.ne.s32.totalorder %s116, %s117
      %p129 = scmp.eq.s32.totalorder %s23, 1
      %p130 = por %p128, %p129
      %p132 = scmp.ne.s32.totalorder %s117, %s131
      %p133 = scmp.eq.s32.totalorder %s23, 0
      %p134 = por %p132, %p133
      %s135 = ssub.s32 %s17, %s24
      %p136 = scmp.eq.s32.totalorder %s135, 0
      %s138 = sadd.s32 %s137, 1
      %s139 = scalar_select %p136, %s137, %s138
      %p142 = pneg %p136
      %p143 = scmp.eq.s32.totalorder %s17, 1
      %p144 = por %p142, %p143
      %p145 = scmp.ne.s32.totalorder %s137, %s140
      %p146 = scmp.eq.s32.totalorder %s17, 0
      %p147 = por %p145, %p146
      %p148 = scmp.ne.s32.totalorder %s137, %s140
      %p149 = scmp.eq.s32.totalorder %s22, 1
      %p150 = por %p148, %p149
      %p151 = scmp.ne.s32.totalorder %s140, %s141
      %p152 = scmp.eq.s32.totalorder %s22, 0
      %p153 = por %p151, %p152
      %p154 = scmp.ne.s32.totalorder %s140, %s141
      %p155 = scmp.eq.s32.totalorder %s23, 1
      %p156 = por %p154, %p155
      %p158 = scmp.ne.s32.totalorder %s141, %s157
      %p159 = scmp.eq.s32.totalorder %s23, 0
      %p160 = por %p158, %p159
      %p161 = scmp.le.s32.totalorder 1, %s17
      %p162 = scmp.lt.s32.totalorder %s17, 3
      %p163 = pnand %p161, %p162
      %p164 = pneg %p163
      // Predicated region
      $region9: #{tpu_custom_call.1} parent=5 // pred_check
        _
      $region10: #{tpu_custom_call.1} parent=5 // pred_check_branch
        %166 = sbr.rel (%p163) target = $region12
      $region11: #{tpu_custom_call.1} parent=5 // pred_region
        %s167 = ssub.s32 %s17, 1
        // Predicated region
        $region13: #{tpu_custom_call.1} parent=11 // pred_check
          %p168 = pneg %p64
        $region14: #{tpu_custom_call.1} parent=11 // pred_check_branch
          %170 = sbr.rel (%p168) target = $region16
        $region15: #{tpu_custom_call.1} parent=11 // pred_region
          _
        $region16: #{tpu_custom_call.1} parent=11 // pred_fallthru
          _
        // Predicated region
        $region17: #{tpu_custom_call.1} parent=11 // pred_check
          %p171 = pneg %p85
        $region18: #{tpu_custom_call.1} parent=11 // pred_check_branch
          %173 = sbr.rel (%p171) target = $region20
        $region19: #{tpu_custom_call.1} parent=11 // pred_region
          _
        $region20: #{tpu_custom_call.1} parent=11 // pred_fallthru
          _
        // Predicated region
        $region21: #{tpu_custom_call.1} parent=11 // pred_check
          %p174 = pneg %p106
        $region22: #{tpu_custom_call.1} parent=11 // pred_check_branch
          %176 = sbr.rel (%p174) target = $region24
        $region23: #{tpu_custom_call.1} parent=11 // pred_region
          _
        $region24: #{tpu_custom_call.1} parent=11 // pred_fallthru
          _
        // Predicated region
        $region25: #{tpu_custom_call.1} parent=11 // pred_check
          %p177 = pneg %p127
        $region26: #{tpu_custom_call.1} parent=11 // pred_check_branch
          %179 = sbr.rel (%p177) target = $region28
        $region27: #{tpu_custom_call.1} parent=11 // pred_region
          _
        $region28: #{tpu_custom_call.1} parent=11 // pred_fallthru
          _
      $region12: #{tpu_custom_call.1} parent=5 // pred_fallthru
        _
      %p180 = scmp.lt.s32.totalorder %s17, 2
      // Predicated region
      $region29: #{tpu_custom_call.1} parent=5 // pred_check
        %p181 = pneg %p180
      $region30: #{tpu_custom_call.1} parent=5 // pred_check_branch
        %183 = sbr.rel (%p181) target = $region32
      $region31: #{tpu_custom_call.1} parent=5 // pred_region
        // Predicated region
        $region33: #{tpu_custom_call.1} parent=31 // pred_check
          %p184 = pneg %p37
        $region34: #{tpu_custom_call.1} parent=31 // pred_check_branch
          %186 = sbr.rel (%p184) target = $region36
        $region35: #{tpu_custom_call.1} parent=31 // pred_region
          %s187 = sand.u32 %s27, 1
          %s188 = scalar_lea.sflag [#allocation3], %s187
          %s189 = sand.u32 %s27, 1
          %s190 = smul.addr %s189, 32
          %s191 = scalar_lea.vmem [#allocation2], %s190
          %s193 = ssub.s32 512, 512
          %194 = vsyncadd %s188, %s193
          %s195 = smul.addr %s17, 5
          %s196 = smul.addr %s195, 128
          %s197 = scalar_lea.hbm %s0, %s196
          %s199 = sshll.u32 %s191, 4
          %s200 = int_to_ptr.vmem [resolvable:$true] %s199
          %202 = dma.hbm_to_vmem [thread:$0]  %s197, 512, %s200, %s188
        $region36: #{tpu_custom_call.1} parent=31 // pred_fallthru
          _
      $region32: #{tpu_custom_call.1} parent=5 // pred_fallthru
        _
      %p203 = scmp.le.s32.totalorder 1, %s17
      %p204 = scmp.lt.s32.totalorder %s17, 3
      %p205 = pnand %p203, %p204
      %p206 = pneg %p205
      // Predicated region
      $region37: #{tpu_custom_call.1} parent=5 // pred_check
        _
      $region38: #{tpu_custom_call.1} parent=5 // pred_check_branch
        %208 = sbr.rel (%p205) target = $region40
      $region39: #{tpu_custom_call.1} parent=5 // pred_region
        %s209 = ssub.s32 %s17, 1
        %s210 = sand.u32 %s30, 1
        %s211 = scalar_lea.sflag [#allocation3], %s210
        %s212 = sand.u32 %s30, 1
        %s213 = smul.addr %s212, 32
        %s214 = scalar_lea.vmem [#allocation2], %s213
        // Predicated region
        $region41: #{tpu_custom_call.1} parent=39 // pred_check
          %p215 = pneg %p43
        $region42: #{tpu_custom_call.1} parent=39 // pred_check_branch
          %217 = sbr.rel (%p215) target = $region44
        $region43: #{tpu_custom_call.1} parent=39 // pred_region
          %218 = dma.done %s211, 512
        $region44: #{tpu_custom_call.1} parent=39 // pred_fallthru
          _
        %s219 = sand.u32 %s30, 1
        %s220 = scalar_lea.sflag [#allocation3], %s219
        %s221 = sand.u32 %s30, 1
        %s222 = smul.addr %s221, 32
        %s223 = scalar_lea.vmem [#allocation2], %s222
        %p224 = pneg %p43
        %p225 = pneg %p40
        %p226 = pneg %p64
        %p227 = pneg %p61
        %p228 = pneg %p85
        %p229 = pneg %p82
        %p230 = pneg %p106
        %p231 = pneg %p103
        %p232 = pneg %p127
        %p233 = pneg %p124
        %p234 = pneg %p153
        %p235 = pneg %p150
        %s236 = sand.u32 %s140, 1
        %s237 = scalar_lea.sflag [#allocation4], %s236
        %s238 = sand.u32 %s140, 1
        %s239 = smul.addr %s238, 48
        %s240 = scalar_lea.vmem [#allocation5], %s239
        %v241 = vld [vmem:[%s1] sm:$0xff]
        %v242 = vld [vmem:[%s2] sm:$0xff]
        %v243 = vld [vmem:[%s4] sm:$0xff]
        %v244 = vld [vmem:[%s4 + $0x8] sm:$0xff]
        %v245 = vld [vmem:[%s214] sm:$0xff]
        %v246 = vld [vmem:[%s214 + $0x8] sm:$0xff]
        %v247 = vld [vmem:[%s214 + $0x10] sm:$0xff]
        %249 = vset.pattern.permute.xlu0 0
        %250 = vperm.xlu0 %249, %v241
        %v251 = vpop.permute.xlu0 %250
        %v253 = vmul.f32 %v245, %v251
        %v254 = vmul.f32 %v246, %v251
        %v255 = vmul.f32 %v247, %v251
        %v256 = vld [vmem:[%s214] sm:$0xff]
        %v257 = vld [vmem:[%s214 + $0x8] sm:$0xff]
        %v258 = vld [vmem:[%s214 + $0x10] sm:$0xff]
        %v259 = vld [vmem:[%s214 + $0x18] sm:$0xff]
        %260 = vset.pattern.permute.xlu0 1
        %261 = vperm.xlu0 %260, %v241
        %v262 = vpop.permute.xlu0 %261
        %v264 = vmul.f32 %v256, %v262
        %v265 = vmul.f32 %v257, %v262
        %v266 = vmul.f32 %v258, %v262
        %v267 = vmul.f32 %v259, %v262
        %272 = vrot.lane.b32.xlu0 %v264, 127
        %v273 = vpop.permute.xlu0 %272
        %274 = vrot.lane.b32.xlu0 %v265, 127
        %v275 = vpop.permute.xlu0 %274
        %276 = vrot.lane.b32.xlu0 %v266, 127
        %v277 = vpop.permute.xlu0 %276
        %278 = vrot.lane.b32.xlu0 %v267, 127
        %v279 = vpop.permute.xlu0 %278
        %vm280 = vcmask 1039360
        %v281 = vsel %vm280, %v273, %v275
        %v282 = vsel %vm280, %v275, %v277
        %v283 = vsel %vm280, %v277, %v279
        %v287 = vadd.f32 %v253, %v281
        %v288 = vadd.f32 %v254, %v282
        %v289 = vadd.f32 %v255, %v283
        %290 = vset.pattern.permute.xlu0 2
        %291 = vperm.xlu0 %290, %v241
        %v292 = vpop.permute.xlu0 %291
        %v294 = vmul.f32 %v256, %v292
        %v295 = vmul.f32 %v257, %v292
        %v296 = vmul.f32 %v258, %v292
        %v297 = vmul.f32 %v259, %v292
        %302 = vrot.lane.b32.xlu0 %v294, 126
        %v303 = vpop.permute.xlu0 %302
        %304 = vrot.lane.b32.xlu0 %v295, 126
        %v305 = vpop.permute.xlu0 %304
        %306 = vrot.lane.b32.xlu0 %v296, 126
        %v307 = vpop.permute.xlu0 %306
        %308 = vrot.lane.b32.xlu0 %v297, 126
        %v309 = vpop.permute.xlu0 %308
        %vm310 = vcmask 1031168
        %v311 = vsel %vm310, %v303, %v305
        %v312 = vsel %vm310, %v305, %v307
        %v313 = vsel %vm310, %v307, %v309
        %v317 = vadd.f32 %v287, %v311
        %v318 = vadd.f32 %v288, %v312
        %v319 = vadd.f32 %v289, %v313
        %320 = vset.pattern.permute.xlu0 3
        %321 = vperm.xlu0 %320, %v241
        %v322 = vpop.permute.xlu0 %321
        %v324 = vmul.f32 %v256, %v322
        %v325 = vmul.f32 %v257, %v322
        %v326 = vmul.f32 %v258, %v322
        %v327 = vmul.f32 %v259, %v322
        %332 = vrot.lane.b32.xlu0 %v324, 110
        %v333 = vpop.permute.xlu0 %332
        %334 = vrot.lane.b32.xlu0 %v325, 110
        %v335 = vpop.permute.xlu0 %334
        %336 = vrot.lane.b32.xlu0 %v326, 110
        %v337 = vpop.permute.xlu0 %336
        %338 = vrot.lane.b32.xlu0 %v327, 110
        %v339 = vpop.permute.xlu0 %338
        %vm340 = vcmask 900096
        %v341 = vsel %vm340, %v333, %v335
        %v342 = vsel %vm340, %v335, %v337
        %v343 = vsel %vm340, %v337, %v339
        %v347 = vadd.f32 %v317, %v341
        %v348 = vadd.f32 %v318, %v342
        %v349 = vadd.f32 %v319, %v343
        %350 = vset.pattern.permute.xlu0 4
        %351 = vperm.xlu0 %350, %v241
        %v352 = vpop.permute.xlu0 %351
        %v354 = vmul.f32 %v256, %v352
        %v355 = vmul.f32 %v257, %v352
        %v356 = vmul.f32 %v258, %v352
        %v357 = vmul.f32 %v259, %v352
        %362 = vrot.lane.b32.xlu0 %v354, 109
        %v363 = vpop.permute.xlu0 %362
        %364 = vrot.lane.b32.xlu0 %v355, 109
        %v365 = vpop.permute.xlu0 %364
        %366 = vrot.lane.b32.xlu0 %v356, 109
        %v367 = vpop.permute.xlu0 %366
        %368 = vrot.lane.b32.xlu0 %v357, 109
        %v369 = vpop.permute.xlu0 %368
        %vm370 = vcmask 891904
        %v371 = vsel %vm370, %v363, %v365
        %v372 = vsel %vm370, %v365, %v367
        %v373 = vsel %vm370, %v367, %v369
        %v377 = vadd.f32 %v347, %v371
        %v378 = vadd.f32 %v348, %v372
        %v379 = vadd.f32 %v349, %v373
        %380 = vset.pattern.permute.xlu0 5
        %381 = vperm.xlu0 %380, %v241
        %v382 = vpop.permute.xlu0 %381
        %v384 = vmul.f32 %v256, %v382
        %v385 = vmul.f32 %v257, %v382
        %v386 = vmul.f32 %v258, %v382
        %v387 = vmul.f32 %v259, %v382
        %392 = vrot.lane.b32.xlu0 %v384, 108
        %v393 = vpop.permute.xlu0 %392
        %394 = vrot.lane.b32.xlu0 %v385, 108
        %v395 = vpop.permute.xlu0 %394
        %396 = vrot.lane.b32.xlu0 %v386, 108
        %v397 = vpop.permute.xlu0 %396
        %398 = vrot.lane.b32.xlu0 %v387, 108
        %v399 = vpop.permute.xlu0 %398
        %vm400 = vcmask 883712
        %v401 = vsel %vm400, %v393, %v395
        %v402 = vsel %vm400, %v395, %v397
        %v403 = vsel %vm400, %v397, %v399
        %v407 = vadd.f32 %v377, %v401
        %v408 = vadd.f32 %v378, %v402
        %v409 = vadd.f32 %v379, %v403
        %410 = vset.pattern.permute.xlu0 6
        %411 = vperm.xlu0 %410, %v241
        %v412 = vpop.permute.xlu0 %411
        %v414 = vmul.f32 %v256, %v412
        %v415 = vmul.f32 %v257, %v412
        %v416 = vmul.f32 %v258, %v412
        %v417 = vmul.f32 %v259, %v412
        %422 = vrot.lane.b32.xlu0 %v414, 92
        %v423 = vpop.permute.xlu0 %422
        %424 = vrot.lane.b32.xlu0 %v415, 92
        %v425 = vpop.permute.xlu0 %424
        %426 = vrot.lane.b32.xlu0 %v416, 92
        %v427 = vpop.permute.xlu0 %426
        %428 = vrot.lane.b32.xlu0 %v417, 92
        %v429 = vpop.permute.xlu0 %428
        %vm430 = vcmask 752640
        %v431 = vsel %vm430, %v423, %v425
        %v432 = vsel %vm430, %v425, %v427
        %v433 = vsel %vm430, %v427, %v429
        %v437 = vadd.f32 %v407, %v431
        %v438 = vadd.f32 %v408, %v432
        %v439 = vadd.f32 %v409, %v433
        %440 = vset.pattern.permute.xlu0 7
        %441 = vperm.xlu0 %440, %v241
        %v442 = vpop.permute.xlu0 %441
        %v444 = vmul.f32 %v256, %v442
        %v445 = vmul.f32 %v257, %v442
        %v446 = vmul.f32 %v258, %v442
        %v447 = vmul.f32 %v259, %v442
        %452 = vrot.lane.b32.xlu0 %v444, 91
        %v453 = vpop.permute.xlu0 %452
        %454 = vrot.lane.b32.xlu0 %v445, 91
        %v455 = vpop.permute.xlu0 %454
        %456 = vrot.lane.b32.xlu0 %v446, 91
        %v457 = vpop.permute.xlu0 %456
        %458 = vrot.lane.b32.xlu0 %v447, 91
        %v459 = vpop.permute.xlu0 %458
        %vm460 = vcmask 744448
        %v461 = vsel %vm460, %v453, %v455
        %v462 = vsel %vm460, %v455, %v457
        %v463 = vsel %vm460, %v457, %v459
        %v467 = vadd.f32 %v437, %v461
        %v468 = vadd.f32 %v438, %v462
        %v469 = vadd.f32 %v439, %v463
        %470 = vset.pattern.permute.xlu0 8
        %471 = vperm.xlu0 %470, %v241
        %v472 = vpop.permute.xlu0 %471
        %v474 = vmul.f32 %v256, %v472
        %v475 = vmul.f32 %v257, %v472
        %v476 = vmul.f32 %v258, %v472
        %v477 = vmul.f32 %v259, %v472
        %482 = vrot.lane.b32.xlu0 %v474, 90
        %v483 = vpop.permute.xlu0 %482
        %484 = vrot.lane.b32.xlu0 %v475, 90
        %v485 = vpop.permute.xlu0 %484
        %486 = vrot.lane.b32.xlu0 %v476, 90
        %v487 = vpop.permute.xlu0 %486
        %488 = vrot.lane.b32.xlu0 %v477, 90
        %v489 = vpop.permute.xlu0 %488
        %vm490 = vcmask 736256
        %v491 = vsel %vm490, %v483, %v485
        %v492 = vsel %vm490, %v485, %v487
        %v493 = vsel %vm490, %v487, %v489
        %v497 = vadd.f32 %v467, %v491
        %v498 = vadd.f32 %v468, %v492
        %v499 = vadd.f32 %v469, %v493
        %501 = vset.pattern.permute.xlu0 0
        %502 = vperm.xlu0 %501, %v242
        %v503 = vpop.permute.xlu0 %502
        %v505 = vadd.f32 %v497, %v503
        %v506 = vadd.f32 %v498, %v503
        %v507 = vadd.f32 %v499, %v503
        %v508 = vmax.f32 %v505, 0.0
        %v509 = vmax.f32 %v506, 0.0
        %v510 = vmax.f32 %v507, 0.0
        %v511 = vld [vmem:[%s3] sm:$0xff]
        %v512 = vld [vmem:[%s3 + $0x8] sm:$0xff]
        %514 = vset.pattern.permute.xlu0 0
        %515 = vperm.xlu0 %514, %v511
        %v516 = vpop.permute.xlu0 %515
        %519 = vset.pattern.permute.xlu0 0
        %520 = vperm.xlu0 %519, %v512
        %v521 = vpop.permute.xlu0 %520
        %v523 = vlaneseq
        %v524 = vshrl.u32 %v523, 7
        %v525 = vsub.s32 0, %v524
        %v526 = vrot.slane %v508, %v525
        %v527 = vlaneseq
        %v528 = vshrl.u32 %v527, 7
        %v529 = vsub.s32 0, %v528
        %v530 = vrot.slane %v509, %v529
        %v531 = vlaneseq
        %v532 = vshrl.u32 %v531, 7
        %v533 = vsub.s32 0, %v532
        %v534 = vrot.slane %v510, %v533
        %v535 = vmul.f32 %v516, %v526
        %v536 = vmul.f32 %v516, %v530
        %v537 = vmul.f32 %v516, %v534
        %v538 = vmul.f32 %v521, %v526
        %v539 = vmul.f32 %v521, %v530
        %v540 = vmul.f32 %v521, %v534
        %541 = vset.pattern.permute.xlu0 1
        %542 = vperm.xlu0 %541, %v511
        %v543 = vpop.permute.xlu0 %542
        %545 = vset.pattern.permute.xlu0 1
        %546 = vperm.xlu0 %545, %v512
        %v547 = vpop.permute.xlu0 %546
        %v549 = vlaneseq
        %v550 = vshrl.u32 %v549, 7
        %v551 = vsub.s32 1, %v550
        %v552 = vrot.slane %v508, %v551
        %v553 = vlaneseq
        %v554 = vshrl.u32 %v553, 7
        %v555 = vsub.s32 1, %v554
        %v556 = vrot.slane %v509, %v555
        %v557 = vlaneseq
        %v558 = vshrl.u32 %v557, 7
        %v559 = vsub.s32 1, %v558
        %v560 = vrot.slane %v510, %v559
        %v561 = vmul.f32 %v543, %v552
        %v562 = vmul.f32 %v543, %v556
        %v563 = vmul.f32 %v543, %v560
        %v564 = vmul.f32 %v547, %v552
        %v565 = vmul.f32 %v547, %v556
        %v566 = vmul.f32 %v547, %v560
        %v567 = vadd.f32 %v535, %v561
        %v568 = vadd.f32 %v536, %v562
        %v569 = vadd.f32 %v537, %v563
        %v570 = vadd.f32 %v538, %v564
        %v571 = vadd.f32 %v539, %v565
        %v572 = vadd.f32 %v540, %v566
        %573 = vset.pattern.permute.xlu0 2
        %574 = vperm.xlu0 %573, %v511
        %v575 = vpop.permute.xlu0 %574
        %577 = vset.pattern.permute.xlu0 2
        %578 = vperm.xlu0 %577, %v512
        %v579 = vpop.permute.xlu0 %578
        %v581 = vlaneseq
        %v582 = vshrl.u32 %v581, 7
        %v583 = vsub.s32 2, %v582
        %v584 = vrot.slane %v508, %v583
        %v585 = vlaneseq
        %v586 = vshrl.u32 %v585, 7
        %v587 = vsub.s32 2, %v586
        %v588 = vrot.slane %v509, %v587
        %v589 = vlaneseq
        %v590 = vshrl.u32 %v589, 7
        %v591 = vsub.s32 2, %v590
        %v592 = vrot.slane %v510, %v591
        %v593 = vmul.f32 %v575, %v584
        %v594 = vmul.f32 %v575, %v588
        %v595 = vmul.f32 %v575, %v592
        %v596 = vmul.f32 %v579, %v584
        %v597 = vmul.f32 %v579, %v588
        %v598 = vmul.f32 %v579, %v592
        %v599 = vadd.f32 %v567, %v593
        %v600 = vadd.f32 %v568, %v594
        %v601 = vadd.f32 %v569, %v595
        %v602 = vadd.f32 %v570, %v596
        %v603 = vadd.f32 %v571, %v597
        %v604 = vadd.f32 %v572, %v598
        %605 = vset.pattern.permute.xlu0 3
        %606 = vperm.xlu0 %605, %v511
        %v607 = vpop.permute.xlu0 %606
        %609 = vset.pattern.permute.xlu0 3
        %610 = vperm.xlu0 %609, %v512
        %v611 = vpop.permute.xlu0 %610
        %v613 = vlaneseq
        %v614 = vshrl.u32 %v613, 7
        %v615 = vsub.s32 3, %v614
        %v616 = vrot.slane %v508, %v615
        %v617 = vlaneseq
        %v618 = vshrl.u32 %v617, 7
        %v619 = vsub.s32 3, %v618
        %v620 = vrot.slane %v509, %v619
        %v621 = vlaneseq
        %v622 = vshrl.u32 %v621, 7
        %v623 = vsub.s32 3, %v622
        %v624 = vrot.slane %v510, %v623
        %v625 = vmul.f32 %v607, %v616
        %v626 = vmul.f32 %v607, %v620
        %v627 = vmul.f32 %v607, %v624
        %v628 = vmul.f32 %v611, %v616
        %v629 = vmul.f32 %v611, %v620
        %v630 = vmul.f32 %v611, %v624
        %v631 = vadd.f32 %v599, %v625
        %v632 = vadd.f32 %v600, %v626
        %v633 = vadd.f32 %v601, %v627
        %v634 = vadd.f32 %v602, %v628
        %v635 = vadd.f32 %v603, %v629
        %v636 = vadd.f32 %v604, %v630
        %637 = vset.pattern.permute.xlu0 4
        %638 = vperm.xlu0 %637, %v511
        %v639 = vpop.permute.xlu0 %638
        %641 = vset.pattern.permute.xlu0 4
        %642 = vperm.xlu0 %641, %v512
        %v643 = vpop.permute.xlu0 %642
        %v645 = vlaneseq
        %v646 = vshrl.u32 %v645, 7
        %v647 = vsub.s32 4, %v646
        %v648 = vrot.slane %v508, %v647
        %v649 = vlaneseq
        %v650 = vshrl.u32 %v649, 7
        %v651 = vsub.s32 4, %v650
        %v652 = vrot.slane %v509, %v651
        %v653 = vlaneseq
        %v654 = vshrl.u32 %v653, 7
        %v655 = vsub.s32 4, %v654
        %v656 = vrot.slane %v510, %v655
        %v657 = vmul.f32 %v639, %v648
        %v658 = vmul.f32 %v639, %v652
        %v659 = vmul.f32 %v639, %v656
        %v660 = vmul.f32 %v643, %v648
        %v661 = vmul.f32 %v643, %v652
        %v662 = vmul.f32 %v643, %v656
        %v663 = vadd.f32 %v631, %v657
        %v664 = vadd.f32 %v632, %v658
        %v665 = vadd.f32 %v633, %v659
        %v666 = vadd.f32 %v634, %v660
        %v667 = vadd.f32 %v635, %v661
        %v668 = vadd.f32 %v636, %v662
        %669 = vset.pattern.permute.xlu0 5
        %670 = vperm.xlu0 %669, %v511
        %v671 = vpop.permute.xlu0 %670
        %673 = vset.pattern.permute.xlu0 5
        %674 = vperm.xlu0 %673, %v512
        %v675 = vpop.permute.xlu0 %674
        %v677 = vlaneseq
        %v678 = vshrl.u32 %v677, 7
        %v679 = vsub.s32 5, %v678
        %v680 = vrot.slane %v508, %v679
        %v681 = vlaneseq
        %v682 = vshrl.u32 %v681, 7
        %v683 = vsub.s32 5, %v682
        %v684 = vrot.slane %v509, %v683
        %v685 = vlaneseq
        %v686 = vshrl.u32 %v685, 7
        %v687 = vsub.s32 5, %v686
        %v688 = vrot.slane %v510, %v687
        %v689 = vmul.f32 %v671, %v680
        %v690 = vmul.f32 %v671, %v684
        %v691 = vmul.f32 %v671, %v688
        %v692 = vmul.f32 %v675, %v680
        %v693 = vmul.f32 %v675, %v684
        %v694 = vmul.f32 %v675, %v688
        %v695 = vadd.f32 %v663, %v689
        %v696 = vadd.f32 %v664, %v690
        %v697 = vadd.f32 %v665, %v691
        %v698 = vadd.f32 %v666, %v692
        %v699 = vadd.f32 %v667, %v693
        %v700 = vadd.f32 %v668, %v694
        %701 = vset.pattern.permute.xlu0 6
        %702 = vperm.xlu0 %701, %v511
        %v703 = vpop.permute.xlu0 %702
        %705 = vset.pattern.permute.xlu0 6
        %706 = vperm.xlu0 %705, %v512
        %v707 = vpop.permute.xlu0 %706
        %v709 = vlaneseq
        %v710 = vshrl.u32 %v709, 7
        %v711 = vsub.s32 6, %v710
        %v712 = vrot.slane %v508, %v711
        %v713 = vlaneseq
        %v714 = vshrl.u32 %v713, 7
        %v715 = vsub.s32 6, %v714
        %v716 = vrot.slane %v509, %v715
        %v717 = vlaneseq
        %v718 = vshrl.u32 %v717, 7
        %v719 = vsub.s32 6, %v718
        %v720 = vrot.slane %v510, %v719
        %v721 = vmul.f32 %v703, %v712
        %v722 = vmul.f32 %v703, %v716
        %v723 = vmul.f32 %v703, %v720
        %v724 = vmul.f32 %v707, %v712
        %v725 = vmul.f32 %v707, %v716
        %v726 = vmul.f32 %v707, %v720
        %v727 = vadd.f32 %v695, %v721
        %v728 = vadd.f32 %v696, %v722
        %v729 = vadd.f32 %v697, %v723
        %v730 = vadd.f32 %v698, %v724
        %v731 = vadd.f32 %v699, %v725
        %v732 = vadd.f32 %v700, %v726
        %733 = vset.pattern.permute.xlu0 7
        %734 = vperm.xlu0 %733, %v511
        %v735 = vpop.permute.xlu0 %734
        %737 = vset.pattern.permute.xlu0 7
        %738 = vperm.xlu0 %737, %v512
        %v739 = vpop.permute.xlu0 %738
        %v741 = vlaneseq
        %v742 = vshrl.u32 %v741, 7
        %v743 = vsub.s32 7, %v742
        %v744 = vrot.slane %v508, %v743
        %v745 = vlaneseq
        %v746 = vshrl.u32 %v745, 7
        %v747 = vsub.s32 7, %v746
        %v748 = vrot.slane %v509, %v747
        %v749 = vlaneseq
        %v750 = vshrl.u32 %v749, 7
        %v751 = vsub.s32 7, %v750
        %v752 = vrot.slane %v510, %v751
        %v753 = vmul.f32 %v735, %v744
        %v754 = vmul.f32 %v735, %v748
        %v755 = vmul.f32 %v735, %v752
        %v756 = vmul.f32 %v739, %v744
        %v757 = vmul.f32 %v739, %v748
        %v758 = vmul.f32 %v739, %v752
        %v759 = vadd.f32 %v727, %v753
        %v760 = vadd.f32 %v728, %v754
        %v761 = vadd.f32 %v729, %v755
        %v762 = vadd.f32 %v730, %v756
        %v763 = vadd.f32 %v731, %v757
        %v764 = vadd.f32 %v732, %v758
        %766 = vset.pattern.permute.xlu0 0
        %767 = vperm.xlu0 %766, %v243
        %v768 = vpop.permute.xlu0 %767
        %771 = vset.pattern.permute.xlu0 0
        %772 = vperm.xlu0 %771, %v244
        %v773 = vpop.permute.xlu0 %772
        %v775 = vadd.f32 %v759, %v768
        %v776 = vadd.f32 %v760, %v768
        %v777 = vadd.f32 %v761, %v768
        %v778 = vadd.f32 %v762, %v773
        %v779 = vadd.f32 %v763, %v773
        %v780 = vadd.f32 %v764, %v773
        %v781 = vmax.f32 %v775, 0.0
        %v782 = vmax.f32 %v776, 0.0
        %v783 = vmax.f32 %v777, 0.0
        %v784 = vmax.f32 %v778, 0.0
        %v785 = vmax.f32 %v779, 0.0
        %v786 = vmax.f32 %v780, 0.0
        %787 = vst [vmem:[%s240] sm:$0xff] %v781
        %788 = vst [vmem:[%s240 + $0x8] sm:$0xff] %v782
        %789 = vst [vmem:[%s240 + $0x10] sm:$0xff] %v783
        %790 = vst [vmem:[%s240 + $0x18] sm:$0xff] %v784
        %791 = vst [vmem:[%s240 + $0x20] sm:$0xff] %v785
        %792 = vst [vmem:[%s240 + $0x28] sm:$0xff] %v786
        %s793 = sand.u32 %s140, 1
        %s794 = scalar_lea.sflag [#allocation4], %s793
        %s795 = sand.u32 %s140, 1
        %s796 = smul.addr %s795, 48
        %s797 = scalar_lea.vmem [#allocation5], %s796
        // Predicated region
        $region45: #{tpu_custom_call.1} parent=39 // pred_check
          %p798 = pneg %p150
        $region46: #{tpu_custom_call.1} parent=39 // pred_check_branch
          %800 = sbr.rel (%p798) target = $region48
        $region47: #{tpu_custom_call.1} parent=39 // pred_region
          %s802 = ssub.s32 768, 768
          %803 = vsyncadd %s794, %s802
          %s804 = smul.addr %s22, 6
          %s805 = smul.addr %s804, 128
          %s806 = scalar_lea.hbm %s5, %s805
          %s807 = sshll.u32 %s797, 4
          %s808 = int_to_ptr.vmem [resolvable:$true] %s807
          %813 = dma.vmem_to_hbm [thread:$0]  %s808, 768, %s806, %s794, 384, 384, 24
        $region48: #{tpu_custom_call.1} parent=39 // pred_fallthru
          _
      $region40: #{tpu_custom_call.1} parent=5 // pred_fallthru
        _
      %p814 = scmp.le.s32.totalorder 2, %s17
      // Predicated region
      $region49: #{tpu_custom_call.1} parent=5 // pred_check
        %p815 = pneg %p814
      $region50: #{tpu_custom_call.1} parent=5 // pred_check_branch
        %817 = sbr.rel (%p815) target = $region52
      $region51: #{tpu_custom_call.1} parent=5 // pred_region
        %s818 = ssub.s32 %s17, 2
        // Predicated region
        $region53: #{tpu_custom_call.1} parent=51 // pred_check
          %p819 = pneg %p156
        $region54: #{tpu_custom_call.1} parent=51 // pred_check_branch
          %821 = sbr.rel (%p819) target = $region56
        $region55: #{tpu_custom_call.1} parent=51 // pred_region
          %s822 = sand.u32 %s141, 1
          %s823 = scalar_lea.sflag [#allocation4], %s822
          %s824 = sand.u32 %s141, 1
          %s825 = smul.addr %s824, 48
          %s826 = scalar_lea.vmem [#allocation5], %s825
          %827 = dma.done %s823, 768
        $region56: #{tpu_custom_call.1} parent=51 // pred_fallthru
          _
      $region52: #{tpu_custom_call.1} parent=5 // pred_fallthru
        _
    $region6: #{tpu_custom_call.1} parent=1 // loop_footer
      %s21 = sadd.s32 1, %s17
    $region7: #{tpu_custom_call.1} parent=1 // loop_footer_branch
      %16 = sbr.rel target = $region3
    $region8: #{tpu_custom_call.1} parent=1 // loop_exit
      _
    %828 = vsyncpa [#allocation3], 1
    %s829 = scalar_lea.sflag [#allocation3], 1
    %830 = vsyncpa %s829, 1
    %831 = vsyncpa [#allocation4], 1
    %s832 = scalar_lea.sflag [#allocation4], 1
    %833 = vsyncpa %s832, 1

</llo_original>
